<compile_context>
chip_gen: v7x
topology: tpu7x:2x2x1
jax: 0.10.0
libtpu: 0.0.40
codegen_flags: <defaults>
</compile_context>

<pallas_src>
import jax
import jax.numpy as jnp
from jax.experimental import pallas as pl
from jax.experimental.pallas import tpu as pltpu


def _cond_emb_kernel(emb_ref, aug_ref, vec_ref, w_aug_ref, w_v1_ref, w_v2_ref,
                     out_ref):
    """out = emb + [aug,1]@[W_aug; label_vec+b2] + SiLU([vec,1]@[W1; b1])@W2.

    The label one-hot is rank-1 (`tmp[:, class_labels] = 1` sets the SAME columns
    for every row), so its contribution plus b2 is a single (1, H) row folded into
    the augmented aug-weight in the wrapper.  MXU operands are bf16, accumulation
    and all elementwise math are f32.
    """
    acc = emb_ref[...].astype(jnp.float32)

    # emb += map_augment(aug) + (onehot @ W_label + b2)   (ones-column fold)
    acc += jnp.dot(aug_ref[...], w_aug_ref[...],
                   preferred_element_type=jnp.float32)

    # emb += Linear2(SiLU(Linear1(vector)))   (b1 folded via ones column)
    h = jnp.dot(vec_ref[...], w_v1_ref[...],
                preferred_element_type=jnp.float32)
    # SiLU; exp lives on the EUP slot, exact reciprocal (EUP/VPU) is not binding.
    h = h * pl.reciprocal(1.0 + jnp.exp(-h), approx=False)
    acc += jnp.dot(h.astype(w_v2_ref.dtype), w_v2_ref[...],
                   preferred_element_type=jnp.float32)

    out_ref[...] = acc.astype(out_ref.dtype)


def _round_up(x, m):
    return ((x + m - 1) // m) * m


def _device_kind():
    try:
        return jax.devices()[0].device_kind.lower()
    except Exception:  # pragma: no cover - defensive
        return ""


def condition_embedding(emb, images, augment_labels, class_labels, vector,
                        params, *, tile_b=None, mxu_dtype=jnp.bfloat16,
                        vmem_limit_bytes=None, single_buffer_weights=True):
    """Pallas-backed equivalent of ConditionEmbedding.forward (eval mode)."""
    B, hidden = emb.shape
    label_dim = params["w_label"].shape[0]
    f32 = jnp.float32

    # ---- label path (rank-1): `tmp[:, class_labels] = 1` sets the SAME columns
    # for every batch row (duplicates count once), so onehot @ W_label is one
    # shared (hidden,) vector.  Fold b_v2 in as well.
    ind = jnp.zeros((label_dim,), dtype=images.dtype).at[class_labels].set(1)
    bias_out = (ind.astype(f32) @ params["w_label"].astype(f32)
                + params["b_v2"].reshape(-1).astype(f32))
    # TODO(synk): training-mode label_dropout (stochastic per-row mask) is not
    # implemented; this is the eval path only.

    # ---- fold biases into the matmuls: ones column on activations, bias row on
    # weights.  A/V are tiny, so the extra K row is free on the MXU.
    ones = jnp.ones((B, 1), f32)
    aug_ext = jnp.concatenate([augment_labels.astype(f32), ones], axis=1)
    vec_ext = jnp.concatenate([vector.astype(f32), ones], axis=1)
    w_aug_ext = jnp.concatenate(
        [params["w_aug"].astype(f32), bias_out[None, :]], axis=0)
    w_v1_ext = jnp.concatenate(
        [params["w_v1"].astype(f32),
         params["b_v1"].reshape(1, hidden).astype(f32)], axis=0)

    # ---- lane-dense hidden axis: pad to a multiple of 128 so the output store is
    # an unmasked full-lane vst (no-op at production hidden like 768/1152).
    Hp = _round_up(hidden, 128)
    ph = Hp - hidden
    pad_h = (lambda a: jnp.pad(a, [(0, 0)] * (a.ndim - 1) + [(0, ph)])) if ph \
        else (lambda a: a)

    emb_p = pad_h(emb)
    w_aug_p = pad_h(w_aug_ext).astype(mxu_dtype)
    w_v1_p = pad_h(w_v1_ext).astype(mxu_dtype)
    w_v2_p = params["w_v2"].astype(f32)
    if ph:
        w_v2_p = jnp.pad(w_v2_p, ((0, ph), (0, ph)))
    w_v2_p = w_v2_p.astype(mxu_dtype)
    aug_ext = aug_ext.astype(mxu_dtype)
    vec_ext = vec_ext.astype(mxu_dtype)
    A1, V1 = aug_ext.shape[1], vec_ext.shape[1]

    # ---- per-generation batch tile: v5e (4x128^2 MXU) -> 128; v6e/v7x (2x256^2) -> 256.
    kind = _device_kind()
    is_v5e = ("v5 lite" in kind) or ("v5e" in kind) or ("v5lite" in kind)
    two_tc = "v7" in kind
    tb = tile_b if tile_b is not None else (128 if is_v5e else 256)
    if two_tc and B > 16:
        # Guarantee >= 2 grid steps so both v7x TensorCores get batch tiles.
        tb = min(tb, _round_up(-(-B // 2), 16))
    if tb >= B:
        tb = B                          # full-batch block (legal; sublane-padded)
    else:
        tb = max(16, (tb // 16) * 16)   # bf16 operands -> multiple of 16 sublanes
    grid = (pl.cdiv(B, tb),)

    itm_io = jnp.dtype(emb.dtype).itemsize
    itm_mx = jnp.dtype(mxu_dtype).itemsize

    def _vmem_budget(weight_bufs):
        lane = lambda n: _round_up(n, 128)
        sub = lambda n, m=8: _round_up(max(n, 1), m)
        # batch-tiled operands are double-buffered by the pipeline (emb in + out,
        # aug_ext, vec_ext); invariant weights use `weight_bufs` buffers.
        tiles = 2 * sub(tb) * (2 * lane(Hp) * itm_io
                               + (lane(A1) + lane(V1)) * itm_mx)
        weights = weight_bufs * (sub(A1, 16) + sub(V1, 16) + sub(Hp, 16)) \
            * lane(Hp) * itm_mx
        need = tiles + weights
        return min(max(int(need * 1.25) + (8 << 20), 16 << 20), 100 << 20)

    def _call(single_buffer):
        const_kwargs = {"pipeline_mode": pl.Buffered(1)} if single_buffer else {}

        def row_spec(cols):      # batch-tiled operands
            return pl.BlockSpec((tb, cols), lambda i: (i, 0))

        def const_spec(rows, cols):   # grid-invariant weights (block re-used)
            return pl.BlockSpec((rows, cols), lambda i: (0, 0), **const_kwargs)

        vlim = vmem_limit_bytes if vmem_limit_bytes is not None \
            else _vmem_budget(1 if single_buffer else 2)

        return pl.pallas_call(
            _cond_emb_kernel,
            out_shape=jax.ShapeDtypeStruct((B, Hp), emb.dtype),
            grid=grid,
            in_specs=[row_spec(Hp), row_spec(A1), row_spec(V1),
                      const_spec(A1, Hp), const_spec(V1, Hp),
                      const_spec(Hp, Hp)],
            out_specs=row_spec(Hp),
            # Reuse emb's HBM buffer for the output (zero-copy when emb is donated).
            # NOTE: in production, passing/emitting bf16 emb would also halve the
            # HBM traffic that binds on v6e; kept at emb.dtype here for semantics.
            input_output_aliases={0: 0},
            compiler_params=pltpu.CompilerParams(
                dimension_semantics=("parallel",),
                vmem_limit_bytes=vlim),
        )(emb_p, aug_ext, vec_ext, w_aug_p, w_v1_p, w_v2_p)

    if single_buffer_weights:
        try:
            out_p = _call(True)
        except Exception:
            # pipeline_mode=pl.Buffered(1) unsupported on this jax version;
            # fall back to the default double-buffered (known-good) pipeline.
            out_p = _call(False)
    else:
        out_p = _call(False)

    return out_p[:, :hidden] if ph else out_p


def reference(emb, images, augment_labels, class_labels, vector, params):
    """Pure-JAX f32 reference mirroring the PyTorch forward."""
    out = emb + augment_labels @ params["w_aug"]
    onehot = jnp.zeros((class_labels.shape[0], params["w_label"].shape[0]),
                       dtype=images.dtype)
    onehot = onehot.at[:, class_labels].set(1)
    out = out + onehot @ params["w_label"]
    h = vector @ params["w_v1"] + params["b_v1"].reshape(1, -1)
    h = h * jax.nn.sigmoid(h)
    out = out + h @ params["w_v2"] + params["b_v2"].reshape(1, -1)
    return out


if __name__ == "__main__":
    # Small shapes consistent with the module.
    batch, hidden = 2, 32
    label_dim, augment_dim, vector_dim = 8, 4, 16

    key = jax.random.PRNGKey(0)
    (k_emb, k_img, k_aug, k_vec, k_wa, k_wl, k_w1, k_b1, k_w2,
     k_b2) = jax.random.split(key, 10)

    emb = jax.random.normal(k_emb, (batch, hidden), dtype=jnp.float32)
    images = jax.random.normal(k_img, (batch, 4, 16, 16), dtype=jnp.float32)
    augment_labels = jax.random.normal(k_aug, (batch, augment_dim), jnp.float32)
    class_labels = jnp.array([1, 5], dtype=jnp.int32)
    vector = jax.random.normal(k_vec, (batch, vector_dim), dtype=jnp.float32)

    # PyTorch Linear weights are [out, in]; stored pre-transposed [in, out].
    # The module zero-inits map_vector[2] (weight & bias); small nonzero values
    # are used here so the second matmul path is exercised (as after training).
    params = {
        "w_aug":   0.02 * jax.random.normal(k_wa, (augment_dim, hidden), jnp.float32),
        "w_label": 0.02 * jax.random.normal(k_wl, (label_dim, hidden), jnp.float32),
        "w_v1":    0.02 * jax.random.normal(k_w1, (vector_dim, hidden), jnp.float32),
        "b_v1":    0.02 * jax.random.normal(k_b1, (hidden,), jnp.float32),
        "w_v2":    0.02 * jax.random.normal(k_w2, (hidden, hidden), jnp.float32),
        "b_v2":    0.02 * jax.random.normal(k_b2, (hidden,), jnp.float32),
    }

    ref = reference(emb, images, augment_labels, class_labels, vector, params)

    out = condition_embedding(emb, images, augment_labels, class_labels,
                              vector, params)
    out = jax.block_until_ready(out)

    def _ok(o):
        return (o.shape == (batch, hidden) and o.dtype == emb.dtype
                and bool(jnp.allclose(o, ref, atol=1e-2, rtol=1e-2)))

    if not _ok(out):
        # Conservative fallback: default double-buffered weight pipeline.
        out = jax.block_until_ready(
            condition_embedding(emb, images, augment_labels, class_labels,
                                vector, params, single_buffer_weights=False))

    # bf16 MXU operands -> relaxed tolerance vs the f32 reference.
    assert _ok(out), "mismatch vs reference"

    print("KERNEL_OK")
</pallas_src>

<mosaic_0001>
module attributes {stable_mosaic.version = 11 : i64} {
  func.func @_cond_emb_kernel(%arg0: i32, %arg1: memref<2x128xf32, #tpu.memory_space<vmem>>, %arg2: memref<2x5xbf16, #tpu.memory_space<vmem>>, %arg3: memref<2x17xbf16, #tpu.memory_space<vmem>>, %arg4: memref<5x128xbf16, #tpu.memory_space<vmem>>, %arg5: memref<17x128xbf16, #tpu.memory_space<vmem>>, %arg6: memref<128x128xbf16, #tpu.memory_space<vmem>>, %arg7: memref<2x128xf32, #tpu.memory_space<vmem>>) attributes {dimension_semantics = [#tpu.dimension_semantics<parallel>], iteration_bounds = array<i64: 1>, scalar_prefetch = 0 : i64, scratch_operands = 0 : i64, tpu.core_type = #tpu.core_type<tc>, window_params = [{transform_indices = @transform_0, window_bounds = array<i64: 2, 128>}, {transform_indices = @transform_1, window_bounds = array<i64: 2, 5>}, {transform_indices = @transform_2, window_bounds = array<i64: 2, 17>}, {pipeline_mode = #tpu.pipeline_mode<synchronous>, transform_indices = @transform_3, window_bounds = array<i64: 5, 128>}, {pipeline_mode = #tpu.pipeline_mode<synchronous>, transform_indices = @transform_4, window_bounds = array<i64: 17, 128>}, {pipeline_mode = #tpu.pipeline_mode<synchronous>, transform_indices = @transform_5, window_bounds = array<i64: 128, 128>}, {transform_indices = @transform_6, window_bounds = array<i64: 2, 128>}]} {
    %c0 = arith.constant 0 : index
    %c0_0 = arith.constant 0 : index
    %0 = vector.load %arg1[%c0, %c0_0] : memref<2x128xf32, #tpu.memory_space<vmem>>, vector<2x128xf32>
    %c0_1 = arith.constant 0 : index
    %c0_2 = arith.constant 0 : index
    %1 = vector.load %arg2[%c0_1, %c0_2] : memref<2x5xbf16, #tpu.memory_space<vmem>>, vector<2x5xbf16>
    %c0_3 = arith.constant 0 : index
    %c0_4 = arith.constant 0 : index
    %2 = vector.load %arg4[%c0_3, %c0_4] : memref<5x128xbf16, #tpu.memory_space<vmem>>, vector<5x128xbf16>
    %cst = arith.constant dense<0.000000e+00> : vector<2x128xf32>
    %3 = tpu.matmul %1, %2, %cst {dimension_numbers = #tpu.dot_dimension_numbers<[1], [0], [0], [1], [0, 0, 1, 1], [], []>} : vector<2x5xbf16>, vector<5x128xbf16>, vector<2x128xf32> -> vector<2x128xf32>
    %4 = arith.addf %0, %3 : vector<2x128xf32>
    %c0_5 = arith.constant 0 : index
    %c0_6 = arith.constant 0 : index
    %5 = vector.load %arg3[%c0_5, %c0_6] : memref<2x17xbf16, #tpu.memory_space<vmem>>, vector<2x17xbf16>
    %c0_7 = arith.constant 0 : index
    %c0_8 = arith.constant 0 : index
    %6 = vector.load %arg5[%c0_7, %c0_8] : memref<17x128xbf16, #tpu.memory_space<vmem>>, vector<17x128xbf16>
    %cst_9 = arith.constant dense<0.000000e+00> : vector<2x128xf32>
    %7 = tpu.matmul %5, %6, %cst_9 {dimension_numbers = #tpu.dot_dimension_numbers<[1], [0], [0], [1], [0, 0, 1, 1], [], []>} : vector<2x17xbf16>, vector<17x128xbf16>, vector<2x128xf32> -> vector<2x128xf32>
    %cst_10 = arith.constant 0.000000e+00 : f32
    %8 = vector.broadcast %cst_10 : f32 to vector<2x128xf32>
    %9 = arith.subf %8, %7 : vector<2x128xf32>
    %10 = math.exp %9 : vector<2x128xf32>
    %cst_11 = arith.constant 1.000000e+00 : f32
    %11 = vector.broadcast %cst_11 : f32 to vector<2x128xf32>
    %12 = arith.addf %11, %10 : vector<2x128xf32>
    %13 = tpu.reciprocal %12 : vector<2x128xf32> -> vector<2x128xf32>
    %14 = arith.mulf %7, %13 : vector<2x128xf32>
    %15 = arith.truncf %14 : vector<2x128xf32> to vector<2x128xbf16>
    %c0_12 = arith.constant 0 : index
    %c0_13 = arith.constant 0 : index
    %16 = vector.load %arg6[%c0_12, %c0_13] : memref<128x128xbf16, #tpu.memory_space<vmem>>, vector<128x128xbf16>
    %cst_14 = arith.constant dense<0.000000e+00> : vector<2x128xf32>
    %17 = tpu.matmul %15, %16, %cst_14 {dimension_numbers = #tpu.dot_dimension_numbers<[1], [0], [0], [1], [0, 0, 1, 1], [], []>} : vector<2x128xbf16>, vector<128x128xbf16>, vector<2x128xf32> -> vector<2x128xf32>
    %18 = arith.addf %4, %17 : vector<2x128xf32>
    %c0_15 = arith.constant 0 : index
    %c0_16 = arith.constant 0 : index
    %19 = vector.load %arg7[%c0_15, %c0_16] : memref<2x128xf32, #tpu.memory_space<vmem>>, vector<2x128xf32>
    tpu.vector_store %arg7[%c0_15, %c0_16], %18 {strides = array<i32>} : memref<2x128xf32, #tpu.memory_space<vmem>>, vector<2x128xf32>,
    return
  }
  func.func @transform_0(%arg0: i32) -> (i32, i32) {
    %c0_i32 = arith.constant 0 : i32
    %c0_i32_0 = arith.constant 0 : i32
    return %arg0, %c0_i32 : i32, i32
  }
  func.func @transform_1(%arg0: i32) -> (i32, i32) {
    %c0_i32 = arith.constant 0 : i32
    %c0_i32_0 = arith.constant 0 : i32
    return %arg0, %c0_i32 : i32, i32
  }
  func.func @transform_2(%arg0: i32) -> (i32, i32) {
    %c0_i32 = arith.constant 0 : i32
    %c0_i32_0 = arith.constant 0 : i32
    return %arg0, %c0_i32 : i32, i32
  }
  func.func @transform_3(%arg0: i32) -> (i32, i32) {
    %c0_i32 = arith.constant 0 : i32
    %c0_i32_0 = arith.constant 0 : i32
    %c0_i32_1 = arith.constant 0 : i32
    return %c0_i32, %c0_i32_0 : i32, i32
  }
  func.func @transform_4(%arg0: i32) -> (i32, i32) {
    %c0_i32 = arith.constant 0 : i32
    %c0_i32_0 = arith.constant 0 : i32
    %c0_i32_1 = arith.constant 0 : i32
    return %c0_i32, %c0_i32_0 : i32, i32
  }
  func.func @transform_5(%arg0: i32) -> (i32, i32) {
    %c0_i32 = arith.constant 0 : i32
    %c0_i32_0 = arith.constant 0 : i32
    %c0_i32_1 = arith.constant 0 : i32
    return %c0_i32, %c0_i32_0 : i32, i32
  }
  func.func @transform_6(%arg0: i32) -> (i32, i32) {
    %c0_i32 = arith.constant 0 : i32
    %c0_i32_0 = arith.constant 0 : i32
    return %arg0, %c0_i32 : i32, i32
  }
}

module attributes {stable_mosaic.version = 11 : i64} {
  func.func @_cond_emb_kernel(%arg0: i32, %arg1: memref<2x128xf32, #tpu.memory_space<vmem>>, %arg2: memref<2x5xbf16, #tpu.memory_space<vmem>>, %arg3: memref<2x17xbf16, #tpu.memory_space<vmem>>, %arg4: memref<5x128xbf16, #tpu.memory_space<vmem>>, %arg5: memref<17x128xbf16, #tpu.memory_space<vmem>>, %arg6: memref<128x128xbf16, #tpu.memory_space<vmem>>, %arg7: memref<2x128xf32, #tpu.memory_space<vmem>>) attributes {dimension_semantics = [#tpu.dimension_semantics<parallel>], iteration_bounds = array<i64: 1>, scalar_prefetch = 0 : i64, scratch_operands = 0 : i64, tpu.core_type = #tpu.core_type<tc>, window_params = [{transform_indices = @transform_0, window_bounds = array<i64: 2, 128>}, {transform_indices = @transform_1, window_bounds = array<i64: 2, 5>}, {transform_indices = @transform_2, window_bounds = array<i64: 2, 17>}, {pipeline_mode = #tpu.pipeline_mode<synchronous>, transform_indices = @transform_3, window_bounds = array<i64: 5, 128>}, {pipeline_mode = #tpu.pipeline_mode<synchronous>, transform_indices = @transform_4, window_bounds = array<i64: 17, 128>}, {pipeline_mode = #tpu.pipeline_mode<synchronous>, transform_indices = @transform_5, window_bounds = array<i64: 128, 128>}, {transform_indices = @transform_6, window_bounds = array<i64: 2, 128>}]} {
    %c0 = arith.constant 0 : index
    %c0_0 = arith.constant 0 : index
    %0 = vector.load %arg1[%c0, %c0_0] : memref<2x128xf32, #tpu.memory_space<vmem>>, vector<2x128xf32>
    %c0_1 = arith.constant 0 : index
    %c0_2 = arith.constant 0 : index
    %1 = vector.load %arg2[%c0_1, %c0_2] : memref<2x5xbf16, #tpu.memory_space<vmem>>, vector<2x5xbf16>
    %c0_3 = arith.constant 0 : index
    %c0_4 = arith.constant 0 : index
    %2 = vector.load %arg4[%c0_3, %c0_4] : memref<5x128xbf16, #tpu.memory_space<vmem>>, vector<5x128xbf16>
    %cst = arith.constant dense<0.000000e+00> : vector<2x128xf32>
    %3 = tpu.matmul %1, %2, %cst {dimension_numbers = #tpu.dot_dimension_numbers<[1], [0], [0], [1], [0, 0, 1, 1], [], []>} : vector<2x5xbf16>, vector<5x128xbf16>, vector<2x128xf32> -> vector<2x128xf32>
    %4 = arith.addf %0, %3 : vector<2x128xf32>
    %c0_5 = arith.constant 0 : index
    %c0_6 = arith.constant 0 : index
    %5 = vector.load %arg3[%c0_5, %c0_6] : memref<2x17xbf16, #tpu.memory_space<vmem>>, vector<2x17xbf16>
    %c0_7 = arith.constant 0 : index
    %c0_8 = arith.constant 0 : index
    %6 = vector.load %arg5[%c0_7, %c0_8] : memref<17x128xbf16, #tpu.memory_space<vmem>>, vector<17x128xbf16>
    %cst_9 = arith.constant dense<0.000000e+00> : vector<2x128xf32>
    %7 = tpu.matmul %5, %6, %cst_9 {dimension_numbers = #tpu.dot_dimension_numbers<[1], [0], [0], [1], [0, 0, 1, 1], [], []>} : vector<2x17xbf16>, vector<17x128xbf16>, vector<2x128xf32> -> vector<2x128xf32>
    %cst_10 = arith.constant 0.000000e+00 : f32
    %8 = vector.broadcast %cst_10 : f32 to vector<2x128xf32>
    %9 = arith.subf %8, %7 : vector<2x128xf32>
    %10 = math.exp %9 : vector<2x128xf32>
    %cst_11 = arith.constant 1.000000e+00 : f32
    %11 = vector.broadcast %cst_11 : f32 to vector<2x128xf32>
    %12 = arith.addf %11, %10 : vector<2x128xf32>
    %13 = tpu.reciprocal %12 : vector<2x128xf32> -> vector<2x128xf32>
    %14 = arith.mulf %7, %13 : vector<2x128xf32>
    %15 = arith.truncf %14 : vector<2x128xf32> to vector<2x128xbf16>
    %c0_12 = arith.constant 0 : index
    %c0_13 = arith.constant 0 : index
    %16 = vector.load %arg6[%c0_12, %c0_13] : memref<128x128xbf16, #tpu.memory_space<vmem>>, vector<128x128xbf16>
    %cst_14 = arith.constant dense<0.000000e+00> : vector<2x128xf32>
    %17 = tpu.matmul %15, %16, %cst_14 {dimension_numbers = #tpu.dot_dimension_numbers<[1], [0], [0], [1], [0, 0, 1, 1], [], []>} : vector<2x128xbf16>, vector<128x128xbf16>, vector<2x128xf32> -> vector<2x128xf32>
    %18 = arith.addf %4, %17 : vector<2x128xf32>
    %c0_15 = arith.constant 0 : index
    %c0_16 = arith.constant 0 : index
    %19 = vector.load %arg7[%c0_15, %c0_16] : memref<2x128xf32, #tpu.memory_space<vmem>>, vector<2x128xf32>
    tpu.vector_store %arg7[%c0_15, %c0_16], %18 {strides = array<i32>} : memref<2x128xf32, #tpu.memory_space<vmem>>, vector<2x128xf32>,
    return
  }
  func.func @transform_0(%arg0: i32) -> (i32, i32) {
    %c0_i32 = arith.constant 0 : i32
    %c0_i32_0 = arith.constant 0 : i32
    return %arg0, %c0_i32 : i32, i32
  }
  func.func @transform_1(%arg0: i32) -> (i32, i32) {
    %c0_i32 = arith.constant 0 : i32
    %c0_i32_0 = arith.constant 0 : i32
    return %arg0, %c0_i32 : i32, i32
  }
  func.func @transform_2(%arg0: i32) -> (i32, i32) {
    %c0_i32 = arith.constant 0 : i32
    %c0_i32_0 = arith.constant 0 : i32
    return %arg0, %c0_i32 : i32, i32
  }
  func.func @transform_3(%arg0: i32) -> (i32, i32) {
    %c0_i32 = arith.constant 0 : i32
    %c0_i32_0 = arith.constant 0 : i32
    %c0_i32_1 = arith.constant 0 : i32
    return %c0_i32, %c0_i32_0 : i32, i32
  }
  func.func @transform_4(%arg0: i32) -> (i32, i32) {
    %c0_i32 = arith.constant 0 : i32
    %c0_i32_0 = arith.constant 0 : i32
    %c0_i32_1 = arith.constant 0 : i32
    return %c0_i32, %c0_i32_0 : i32, i32
  }
  func.func @transform_5(%arg0: i32) -> (i32, i32) {
    %c0_i32 = arith.constant 0 : i32
    %c0_i32_0 = arith.constant 0 : i32
    %c0_i32_1 = arith.constant 0 : i32
    return %c0_i32, %c0_i32_0 : i32, i32
  }
  func.func @transform_6(%arg0: i32) -> (i32, i32) {
    %c0_i32 = arith.constant 0 : i32
    %c0_i32_0 = arith.constant 0 : i32
    return %arg0, %c0_i32 : i32, i32
  }
}

</mosaic_0001>

<llo_original>
// kernel: tpu_custom_call.1
$region0: #{tpu_custom_call.1}
  #allocation0 [shape = 'u32[]', space=smem, size = 0x4, offset = 0x4, fixed_abs, tag = 'smem constant byte address 0x4 - core index']
  #allocation1 [shape = 'u32[144,128]{1,0:T(1,128)}', space=vmem, size = 0x12000, scoped, tag = 'internal scratch']
  %s0 = inlined_call_operand.hbm [shape: f32[2,128], index: 0, kind: input, shape index: {}, may-alias: {0,6}]
  %s1 = inlined_call_operand.vmem [shape: bf16[2,5], index: 1, kind: input, shape index: {}]
  %s2 = inlined_call_operand.vmem [shape: bf16[2,17], index: 2, kind: input, shape index: {}]
  %s3 = inlined_call_operand.vmem [shape: bf16[5,128], index: 3, kind: input, shape index: {}]
  %s4 = inlined_call_operand.vmem [shape: bf16[17,128], index: 4, kind: input, shape index: {}]
  %s5 = inlined_call_operand.hbm [shape: bf16[128,128], index: 5, kind: input, shape index: {}]
  %s6 = inlined_call_operand.hbm [shape: f32[2,128], index: 6, kind: output, shape index: {}, may-alias: {0,6}]
  %s7 = sld [smem:[#allocation0]]
  $region42: #{tpu_custom_call.1} parent=0
    _
  %s9 = ssub.s32 1, %s7
  %s10 = scalar_select 0, %s9, %s7
  $region1: #{tpu_custom_call.1} parent=0
    #allocation2 [shape = 'u8[1024]{0}', space=vmem, size = 0x400, scoped, tag = 'input window, operand 0, single buffered']
    #allocation3 [shape = 's32[1]{0}', space=sflag, size = 0x4, scoped, tag = 'scoped memory for tpu_custom_call.1']
    #allocation4 [shape = 's32[1]{0}', space=sflag, size = 0x4, scoped, tag = 'scoped memory for tpu_custom_call.1']
    #allocation5 [shape = 'u8[32768]{0}', space=vmem, size = 0x8000, scoped, tag = 'input window, operand 5, single buffered']
    #allocation6 [shape = 's32[1]{0}', space=sflag, size = 0x4, scoped, tag = 'scoped memory for tpu_custom_call.1']
    #allocation7 [shape = 'u8[1024]{0}', space=vmem, size = 0x400, scoped, tag = 'output window, operand 0, single buffered']
    %11 = vsyncpa [#allocation3], 0
    %12 = vsyncpa [#allocation6], 0
    %13 = vsyncpa [#allocation4], 0
    // Predicated region
    $region2: #{tpu_custom_call.1} parent=1 // pred_check
      _
    $region3: #{tpu_custom_call.1} parent=1 // pred_check_branch
      %15 = sbr.rel (0) target = $region5
    $region4: #{tpu_custom_call.1} parent=1 // pred_region
      %s17 = ssub.s32 32, 32
      %18 = vsyncadd [#allocation3], %s17
      %s20 = sshll.u32 [#allocation2], 4
      %s21 = int_to_ptr.vmem [resolvable:$true] %s20
      %23 = dma.hbm_to_vmem [thread:$0]  %s0, 32, %s21, [#allocation3]
    $region5: #{tpu_custom_call.1} parent=1 // pred_fallthru
      _
    // Predicated region
    $region6: #{tpu_custom_call.1} parent=1 // pred_check
      _
    $region7: #{tpu_custom_call.1} parent=1 // pred_check_branch
      %25 = sbr.rel (0) target = $region9
    $region8: #{tpu_custom_call.1} parent=1 // pred_region
      _
    $region9: #{tpu_custom_call.1} parent=1 // pred_fallthru
      _
    // Predicated region
    $region10: #{tpu_custom_call.1} parent=1 // pred_check
      _
    $region11: #{tpu_custom_call.1} parent=1 // pred_check_branch
      %27 = sbr.rel (0) target = $region13
    $region12: #{tpu_custom_call.1} parent=1 // pred_region
      _
    $region13: #{tpu_custom_call.1} parent=1 // pred_fallthru
      _
    // Predicated region
    $region14: #{tpu_custom_call.1} parent=1 // pred_check
      _
    $region15: #{tpu_custom_call.1} parent=1 // pred_check_branch
      %29 = sbr.rel (0) target = $region17
    $region16: #{tpu_custom_call.1} parent=1 // pred_region
      _
    $region17: #{tpu_custom_call.1} parent=1 // pred_fallthru
      _
    // Predicated region
    $region18: #{tpu_custom_call.1} parent=1 // pred_check
      _
    $region19: #{tpu_custom_call.1} parent=1 // pred_check_branch
      %31 = sbr.rel (0) target = $region21
    $region20: #{tpu_custom_call.1} parent=1 // pred_region
      _
    $region21: #{tpu_custom_call.1} parent=1 // pred_fallthru
      _
    // Predicated region
    $region22: #{tpu_custom_call.1} parent=1 // pred_check
      _
    $region23: #{tpu_custom_call.1} parent=1 // pred_check_branch
      %33 = sbr.rel (0) target = $region25
    $region24: #{tpu_custom_call.1} parent=1 // pred_region
      %s35 = ssub.s32 1024, 1024
      %36 = vsyncadd [#allocation6], %s35
      %s37 = sshll.u32 [#allocation5], 4
      %s38 = int_to_ptr.vmem [resolvable:$true] %s37
      %43 = dma.hbm_to_vmem [thread:$0]  %s5, 1024, %s38, [#allocation6], 64, 64, 4
    $region25: #{tpu_custom_call.1} parent=1 // pred_fallthru
      _
    // Predicated region
    $region26: #{tpu_custom_call.1} parent=1 // pred_check
      _
    $region27: #{tpu_custom_call.1} parent=1 // pred_check_branch
      %45 = sbr.rel (0) target = $region29
    $region28: #{tpu_custom_call.1} parent=1 // pred_region
      %46 = dma.done [#allocation3], 32
    $region29: #{tpu_custom_call.1} parent=1 // pred_fallthru
      _
    // Predicated region
    $region30: #{tpu_custom_call.1} parent=1 // pred_check
      _
    $region31: #{tpu_custom_call.1} parent=1 // pred_check_branch
      %48 = sbr.rel (0) target = $region33
    $region32: #{tpu_custom_call.1} parent=1 // pred_region
      %49 = dma.done [#allocation6], 1024
    $region33: #{tpu_custom_call.1} parent=1 // pred_fallthru
      _
    %v51 = vld [vmem:[#allocation2] sm:$0x3]
    %v52 = vld [vmem:[%s1] sm:$0x1]
    %v53 = vld [vmem:[%s3] sm:$0x7]
    %vm54 = vcmask 39936
    %v56 = vsel %vm54, %v52, 0
    %vm58 = vcmask 1041408
    %vm59 = vcmask 1042432
    %v60 = vsel %vm58, 4294967295, 65535
    %v61 = vsel %vm59, %v60, 0
    %v63 = vand.u32 %v53, %v61
    %65 = vmatprep.subr.bf16.mxu0 0
    %66 = vmatpush1.bf16.msra.mxu0 %v63
    %67 = vmatprep.subr.bf16.mxu0 0
    %68 = vmatpush1.bf16.msra.mxu0 0
    %69 = vmatprep.subr.bf16.mxu0 0
    %70 = vmatpush1.bf16.msra.mxu0 0
    %71 = vmatprep.subr.bf16.mxu0 0
    %72 = vmatpush1.bf16.msra.mxu0 0
    %73 = vmatprep.subr.bf16.mxu0 0
    %74 = vmatpush1.bf16.msra.mxu0 0
    %75 = vmatprep.subr.bf16.mxu0 0
    %76 = vmatpush1.bf16.msra.mxu0 0
    %77 = vmatprep.subr.bf16.mxu0 0
    %78 = vmatpush1.bf16.msra.mxu0 0
    %79 = vmatprep.subr.bf16.mxu0 0
    %80 = vmatpush1.bf16.msra.mxu0 0
    %81 = vmatprep.subr.bf16.mxu0 0
    %82 = vmatpush1.bf16.msra.mxu0 0
    %83 = vmatprep.subr.bf16.mxu0 0
    %84 = vmatpush1.bf16.msra.mxu0 0
    %85 = vmatprep.subr.bf16.mxu0 0
    %86 = vmatpush1.bf16.msra.mxu0 0
    %87 = vmatprep.subr.bf16.mxu0 0
    %88 = vmatpush1.bf16.msra.mxu0 0
    %89 = vmatprep.subr.bf16.mxu0 0
    %90 = vmatpush1.bf16.msra.mxu0 0
    %91 = vmatprep.subr.bf16.mxu0 0
    %92 = vmatpush1.bf16.msra.mxu0 0
    %93 = vmatprep.subr.bf16.mxu0 0
    %94 = vmatpush1.bf16.msra.mxu0 0
    %95 = vmatprep.subr.bf16.mxu0 0
    %96 = vmatpush1.bf16.msra.mxu0 0
    %97 = vmatprep.mubr.bf16.mxu0 0
    %98 = vmatmul.mubr.bf16.gmra.mrb[0].mxu0 %v56
    %v99 = vpop.f32.mrb[0].mxu0
    %v100 = vadd.f32 0.0, %v99
    %v101 = vpop.f32.mrb[0].mxu0
    %v102 = vpop.f32.mrb[0].mxu0
    %v103 = vpop.f32.mrb[0].mxu0
    %104 = vdwg.mxu0
    %v105 = vadd.f32 %v51, %v100
    %v106 = vld [vmem:[%s2] sm:$0x1]
    %v107 = vld [vmem:[%s4] sm:$0xf]
    %v108 = vld [vmem:[%s4 + $0x4] sm:$0xf]
    %v109 = vld [vmem:[%s4 + $0x8] sm:$0x1]
    %v113 = vunpack.c.l.b16 %v107
    %v114 = vunpack.c.l.b16 %v108
    %v115 = vunpack.c.l.b16 %v109
    %v116 = vpack.c.b16 %v114, %v113
    %v117 = vpack.c.b16 %v115, %v115
    %vm119 = vcmask 138240
    %v121 = vsel %vm119, %v106, 0
    %vm123 = vcmask 1040384
    %v124 = vsel 0, 4294967295, 65535
    %v125 = vsel %vm123, %v124, 0
    %v127 = vand.u32 %v117, %v125
    %129 = vmatprep.subr.bf16.mxu0 0
    %130 = vmatpush1.bf16.msra.mxu0 %v116
    %131 = vmatprep.subr.bf16.mxu0 0
    %132 = vmatpush1.bf16.msra.mxu0 %v127
    %133 = vmatprep.subr.bf16.mxu0 0
    %134 = vmatpush1.bf16.msra.mxu0 0
    %135 = vmatprep.subr.bf16.mxu0 0
    %136 = vmatpush1.bf16.msra.mxu0 0
    %137 = vmatprep.subr.bf16.mxu0 0
    %138 = vmatpush1.bf16.msra.mxu0 0
    %139 = vmatprep.subr.bf16.mxu0 0
    %140 = vmatpush1.bf16.msra.mxu0 0
    %141 = vmatprep.subr.bf16.mxu0 0
    %142 = vmatpush1.bf16.msra.mxu0 0
    %143 = vmatprep.subr.bf16.mxu0 0
    %144 = vmatpush1.bf16.msra.mxu0 0
    %145 = vmatprep.subr.bf16.mxu0 0
    %146 = vmatpush1.bf16.msra.mxu0 0
    %147 = vmatprep.subr.bf16.mxu0 0
    %148 = vmatpush1.bf16.msra.mxu0 0
    %149 = vmatprep.subr.bf16.mxu0 0
    %150 = vmatpush1.bf16.msra.mxu0 0
    %151 = vmatprep.subr.bf16.mxu0 0
    %152 = vmatpush1.bf16.msra.mxu0 0
    %153 = vmatprep.subr.bf16.mxu0 0
    %154 = vmatpush1.bf16.msra.mxu0 0
    %155 = vmatprep.subr.bf16.mxu0 0
    %156 = vmatpush1.bf16.msra.mxu0 0
    %157 = vmatprep.subr.bf16.mxu0 0
    %158 = vmatpush1.bf16.msra.mxu0 0
    %159 = vmatprep.subr.bf16.mxu0 0
    %160 = vmatpush1.bf16.msra.mxu0 0
    %161 = vmatprep.mubr.bf16.mxu0 0
    %162 = vmatmul.mubr.bf16.gmra.mrb[0].mxu0 %v121
    %v163 = vpop.f32.mrb[0].mxu0
    %v164 = vadd.f32 0.0, %v163
    %v165 = vpop.f32.mrb[0].mxu0
    %v166 = vpop.f32.mrb[0].mxu0
    %v167 = vpop.f32.mrb[0].mxu0
    %168 = vdwg.mxu0
    %v169 = vsub.f32 0.0, %v164
    %v170 = vmul.f32 %v169, 1.442695
    %v171 = vpow.pop %v170
    %v172 = vadd.f32 %v171, 1.0
    %v173 = vrcp.pop %v172
    %v174 = vmul.f32 %v164, %v173
    %v175 = vpack.c.bf16 %v174, %v174
    %v176 = vld [vmem:[#allocation5] sm:$0xf]
    %v177 = vld [vmem:[#allocation5 + $0x4] sm:$0xf]
    %v178 = vld [vmem:[#allocation5 + $0x8] sm:$0xf]
    %v179 = vld [vmem:[#allocation5 + $0xc] sm:$0xf]
    %v180 = vld [vmem:[#allocation5 + $0x10] sm:$0xf]
    %v181 = vld [vmem:[#allocation5 + $0x14] sm:$0xf]
    %v182 = vld [vmem:[#allocation5 + $0x18] sm:$0xf]
    %v183 = vld [vmem:[#allocation5 + $0x1c] sm:$0xf]
    %v184 = vld [vmem:[#allocation5 + $0x20] sm:$0xf]
    %v185 = vld [vmem:[#allocation5 + $0x24] sm:$0xf]
    %v186 = vld [vmem:[#allocation5 + $0x28] sm:$0xf]
    %v187 = vld [vmem:[#allocation5 + $0x2c] sm:$0xf]
    %v188 = vld [vmem:[#allocation5 + $0x30] sm:$0xf]
    %v189 = vld [vmem:[#allocation5 + $0x34] sm:$0xf]
    %v190 = vld [vmem:[#allocation5 + $0x38] sm:$0xf]
    %v191 = vld [vmem:[#allocation5 + $0x3c] sm:$0xf]
    %v208 = vunpack.c.l.b16 %v176
    %v209 = vunpack.c.l.b16 %v177
    %v210 = vunpack.c.l.b16 %v178
    %v211 = vunpack.c.l.b16 %v179
    %v212 = vunpack.c.l.b16 %v180
    %v213 = vunpack.c.l.b16 %v181
    %v214 = vunpack.c.l.b16 %v182
    %v215 = vunpack.c.l.b16 %v183
    %v216 = vunpack.c.l.b16 %v184
    %v217 = vunpack.c.l.b16 %v185
    %v218 = vunpack.c.l.b16 %v186
    %v219 = vunpack.c.l.b16 %v187
    %v220 = vunpack.c.l.b16 %v188
    %v221 = vunpack.c.l.b16 %v189
    %v222 = vunpack.c.l.b16 %v190
    %v223 = vunpack.c.l.b16 %v191
    %v224 = vpack.c.b16 %v209, %v208
    %v225 = vpack.c.b16 %v211, %v210
    %v226 = vpack.c.b16 %v213, %v212
    %v227 = vpack.c.b16 %v215, %v214
    %v228 = vpack.c.b16 %v217, %v216
    %v229 = vpack.c.b16 %v219, %v218
    %v230 = vpack.c.b16 %v221, %v220
    %v231 = vpack.c.b16 %v223, %v222
    %240 = vmatprep.subr.bf16.mxu0 0
    %241 = vmatpush1.bf16.msra.mxu0 %v224
    %242 = vmatprep.subr.bf16.mxu0 0
    %243 = vmatpush1.bf16.msra.mxu0 %v225
    %244 = vmatprep.subr.bf16.mxu0 0
    %245 = vmatpush1.bf16.msra.mxu0 %v226
    %246 = vmatprep.subr.bf16.mxu0 0
    %247 = vmatpush1.bf16.msra.mxu0 %v227
    %248 = vmatprep.subr.bf16.mxu0 0
    %249 = vmatpush1.bf16.msra.mxu0 %v228
    %250 = vmatprep.subr.bf16.mxu0 0
    %251 = vmatpush1.bf16.msra.mxu0 %v229
    %252 = vmatprep.subr.bf16.mxu0 0
    %253 = vmatpush1.bf16.msra.mxu0 %v230
    %254 = vmatprep.subr.bf16.mxu0 0
    %255 = vmatpush1.bf16.msra.mxu0 %v231
    %256 = vmatprep.subr.bf16.mxu0 0
    %257 = vmatpush1.bf16.msra.mxu0 0
    %258 = vmatprep.subr.bf16.mxu0 0
    %259 = vmatpush1.bf16.msra.mxu0 0
    %260 = vmatprep.subr.bf16.mxu0 0
    %261 = vmatpush1.bf16.msra.mxu0 0
    %262 = vmatprep.subr.bf16.mxu0 0
    %263 = vmatpush1.bf16.msra.mxu0 0
    %264 = vmatprep.subr.bf16.mxu0 0
    %265 = vmatpush1.bf16.msra.mxu0 0
    %266 = vmatprep.subr.bf16.mxu0 0
    %267 = vmatpush1.bf16.msra.mxu0 0
    %268 = vmatprep.subr.bf16.mxu0 0
    %269 = vmatpush1.bf16.msra.mxu0 0
    %270 = vmatprep.subr.bf16.mxu0 0
    %271 = vmatpush1.bf16.msra.mxu0 0
    %272 = vmatprep.mubr.bf16.mxu0 0
    %273 = vmatmul.mubr.bf16.gmra.mrb[0].mxu0 %v175
    %v274 = vpop.f32.mrb[0].mxu0
    %v275 = vadd.f32 0.0, %v274
    %v276 = vpop.f32.mrb[0].mxu0
    %v277 = vpop.f32.mrb[0].mxu0
    %v278 = vpop.f32.mrb[0].mxu0
    %279 = vdwg.mxu0
    %v280 = vadd.f32 %v105, %v275
    %281 = vst [vmem:[#allocation7] sm:$0x3] %v280
    // Predicated region
    $region34: #{tpu_custom_call.1} parent=1 // pred_check
      _
    $region35: #{tpu_custom_call.1} parent=1 // pred_check_branch
      %283 = sbr.rel (0) target = $region37
    $region36: #{tpu_custom_call.1} parent=1 // pred_region
      %s285 = ssub.s32 32, 32
      %286 = vsyncadd [#allocation4], %s285
      %s288 = sshll.u32 [#allocation7], 4
      %s289 = int_to_ptr.vmem [resolvable:$true] %s288
      %291 = dma.vmem_to_hbm [thread:$0]  %s289, 32, %s6, [#allocation4]
    $region37: #{tpu_custom_call.1} parent=1 // pred_fallthru
      _
    // Predicated region
    $region38: #{tpu_custom_call.1} parent=1 // pred_check
      _
    $region39: #{tpu_custom_call.1} parent=1 // pred_check_branch
      %293 = sbr.rel (0) target = $region41
    $region40: #{tpu_custom_call.1} parent=1 // pred_region
      %294 = dma.done [#allocation4], 32
    $region41: #{tpu_custom_call.1} parent=1 // pred_fallthru
      _
    %295 = vsyncpa [#allocation3], 1
    %296 = vsyncpa [#allocation6], 1
    %297 = vsyncpa [#allocation4], 1

// kernel: tpu_custom_call.1
$region0: #{tpu_custom_call.1}
  #allocation0 [shape = 'u32[]', space=smem, size = 0x4, offset = 0x4, fixed_abs, tag = 'smem constant byte address 0x4 - core index']
  #allocation1 [shape = 'u32[144,128]{1,0:T(1,128)}', space=vmem, size = 0x12000, scoped, tag = 'internal scratch']
  %s0 = inlined_call_operand.hbm [shape: f32[2,128], index: 0, kind: input, shape index: {}, may-alias: {0,6}]
  %s1 = inlined_call_operand.vmem [shape: bf16[2,5], index: 1, kind: input, shape index: {}]
  %s2 = inlined_call_operand.vmem [shape: bf16[2,17], index: 2, kind: input, shape index: {}]
  %s3 = inlined_call_operand.vmem [shape: bf16[5,128], index: 3, kind: input, shape index: {}]
  %s4 = inlined_call_operand.vmem [shape: bf16[17,128], index: 4, kind: input, shape index: {}]
  %s5 = inlined_call_operand.hbm [shape: bf16[128,128], index: 5, kind: input, shape index: {}]
  %s6 = inlined_call_operand.hbm [shape: f32[2,128], index: 6, kind: output, shape index: {}, may-alias: {0,6}]
  %s7 = sld [smem:[#allocation0]]
  $region42: #{tpu_custom_call.1} parent=0
    _
  %s9 = ssub.s32 1, %s7
  %s10 = scalar_select 0, %s9, %s7
  $region1: #{tpu_custom_call.1} parent=0
    #allocation2 [shape = 'u8[1024]{0}', space=vmem, size = 0x400, scoped, tag = 'input window, operand 0, single buffered']
    #allocation3 [shape = 's32[1]{0}', space=sflag, size = 0x4, scoped, tag = 'scoped memory for tpu_custom_call.1']
    #allocation4 [shape = 's32[1]{0}', space=sflag, size = 0x4, scoped, tag = 'scoped memory for tpu_custom_call.1']
    #allocation5 [shape = 'u8[32768]{0}', space=vmem, size = 0x8000, scoped, tag = 'input window, operand 5, single buffered']
    #allocation6 [shape = 's32[1]{0}', space=sflag, size = 0x4, scoped, tag = 'scoped memory for tpu_custom_call.1']
    #allocation7 [shape = 'u8[1024]{0}', space=vmem, size = 0x400, scoped, tag = 'output window, operand 0, single buffered']
    %11 = vsyncpa [#allocation3], 0
    %12 = vsyncpa [#allocation6], 0
    %13 = vsyncpa [#allocation4], 0
    // Predicated region
    $region2: #{tpu_custom_call.1} parent=1 // pred_check
      _
    $region3: #{tpu_custom_call.1} parent=1 // pred_check_branch
      %15 = sbr.rel (0) target = $region5
    $region4: #{tpu_custom_call.1} parent=1 // pred_region
      %s17 = ssub.s32 32, 32
      %18 = vsyncadd [#allocation3], %s17
      %s20 = sshll.u32 [#allocation2], 4
      %s21 = int_to_ptr.vmem [resolvable:$true] %s20
      %23 = dma.hbm_to_vmem [thread:$0]  %s0, 32, %s21, [#allocation3]
    $region5: #{tpu_custom_call.1} parent=1 // pred_fallthru
      _
    // Predicated region
    $region6: #{tpu_custom_call.1} parent=1 // pred_check
      _
    $region7: #{tpu_custom_call.1} parent=1 // pred_check_branch
      %25 = sbr.rel (0) target = $region9
    $region8: #{tpu_custom_call.1} parent=1 // pred_region
      _
    $region9: #{tpu_custom_call.1} parent=1 // pred_fallthru
      _
    // Predicated region
    $region10: #{tpu_custom_call.1} parent=1 // pred_check
      _
    $region11: #{tpu_custom_call.1} parent=1 // pred_check_branch
      %27 = sbr.rel (0) target = $region13
    $region12: #{tpu_custom_call.1} parent=1 // pred_region
      _
    $region13: #{tpu_custom_call.1} parent=1 // pred_fallthru
      _
    // Predicated region
    $region14: #{tpu_custom_call.1} parent=1 // pred_check
      _
    $region15: #{tpu_custom_call.1} parent=1 // pred_check_branch
      %29 = sbr.rel (0) target = $region17
    $region16: #{tpu_custom_call.1} parent=1 // pred_region
      _
    $region17: #{tpu_custom_call.1} parent=1 // pred_fallthru
      _
    // Predicated region
    $region18: #{tpu_custom_call.1} parent=1 // pred_check
      _
    $region19: #{tpu_custom_call.1} parent=1 // pred_check_branch
      %31 = sbr.rel (0) target = $region21
    $region20: #{tpu_custom_call.1} parent=1 // pred_region
      _
    $region21: #{tpu_custom_call.1} parent=1 // pred_fallthru
      _
    // Predicated region
    $region22: #{tpu_custom_call.1} parent=1 // pred_check
      _
    $region23: #{tpu_custom_call.1} parent=1 // pred_check_branch
      %33 = sbr.rel (0) target = $region25
    $region24: #{tpu_custom_call.1} parent=1 // pred_region
      %s35 = ssub.s32 1024, 1024
      %36 = vsyncadd [#allocation6], %s35
      %s37 = sshll.u32 [#allocation5], 4
      %s38 = int_to_ptr.vmem [resolvable:$true] %s37
      %43 = dma.hbm_to_vmem [thread:$0]  %s5, 1024, %s38, [#allocation6], 64, 64, 4
    $region25: #{tpu_custom_call.1} parent=1 // pred_fallthru
      _
    // Predicated region
    $region26: #{tpu_custom_call.1} parent=1 // pred_check
      _
    $region27: #{tpu_custom_call.1} parent=1 // pred_check_branch
      %45 = sbr.rel (0) target = $region29
    $region28: #{tpu_custom_call.1} parent=1 // pred_region
      %46 = dma.done [#allocation3], 32
    $region29: #{tpu_custom_call.1} parent=1 // pred_fallthru
      _
    // Predicated region
    $region30: #{tpu_custom_call.1} parent=1 // pred_check
      _
    $region31: #{tpu_custom_call.1} parent=1 // pred_check_branch
      %48 = sbr.rel (0) target = $region33
    $region32: #{tpu_custom_call.1} parent=1 // pred_region
      %49 = dma.done [#allocation6], 1024
    $region33: #{tpu_custom_call.1} parent=1 // pred_fallthru
      _
    %v51 = vld [vmem:[#allocation2] sm:$0x3]
    %v52 = vld [vmem:[%s1] sm:$0x1]
    %v53 = vld [vmem:[%s3] sm:$0x7]
    %vm54 = vcmask 39936
    %v56 = vsel %vm54, %v52, 0
    %vm58 = vcmask 1041408
    %vm59 = vcmask 1042432
    %v60 = vsel %vm58, 4294967295, 65535
    %v61 = vsel %vm59, %v60, 0
    %v63 = vand.u32 %v53, %v61
    %65 = vmatprep.subr.bf16.mxu0 0
    %66 = vmatpush1.bf16.msra.mxu0 %v63
    %67 = vmatprep.subr.bf16.mxu0 0
    %68 = vmatpush1.bf16.msra.mxu0 0
    %69 = vmatprep.subr.bf16.mxu0 0
    %70 = vmatpush1.bf16.msra.mxu0 0
    %71 = vmatprep.subr.bf16.mxu0 0
    %72 = vmatpush1.bf16.msra.mxu0 0
    %73 = vmatprep.subr.bf16.mxu0 0
    %74 = vmatpush1.bf16.msra.mxu0 0
    %75 = vmatprep.subr.bf16.mxu0 0
    %76 = vmatpush1.bf16.msra.mxu0 0
    %77 = vmatprep.subr.bf16.mxu0 0
    %78 = vmatpush1.bf16.msra.mxu0 0
    %79 = vmatprep.subr.bf16.mxu0 0
    %80 = vmatpush1.bf16.msra.mxu0 0
    %81 = vmatprep.subr.bf16.mxu0 0
    %82 = vmatpush1.bf16.msra.mxu0 0
    %83 = vmatprep.subr.bf16.mxu0 0
    %84 = vmatpush1.bf16.msra.mxu0 0
    %85 = vmatprep.subr.bf16.mxu0 0
    %86 = vmatpush1.bf16.msra.mxu0 0
    %87 = vmatprep.subr.bf16.mxu0 0
    %88 = vmatpush1.bf16.msra.mxu0 0
    %89 = vmatprep.subr.bf16.mxu0 0
    %90 = vmatpush1.bf16.msra.mxu0 0
    %91 = vmatprep.subr.bf16.mxu0 0
    %92 = vmatpush1.bf16.msra.mxu0 0
    %93 = vmatprep.subr.bf16.mxu0 0
    %94 = vmatpush1.bf16.msra.mxu0 0
    %95 = vmatprep.subr.bf16.mxu0 0
    %96 = vmatpush1.bf16.msra.mxu0 0
    %97 = vmatprep.mubr.bf16.mxu0 0
    %98 = vmatmul.mubr.bf16.gmra.mrb[0].mxu0 %v56
    %v99 = vpop.f32.mrb[0].mxu0
    %v100 = vadd.f32 0.0, %v99
    %v101 = vpop.f32.mrb[0].mxu0
    %v102 = vpop.f32.mrb[0].mxu0
    %v103 = vpop.f32.mrb[0].mxu0
    %104 = vdwg.mxu0
    %v105 = vadd.f32 %v51, %v100
    %v106 = vld [vmem:[%s2] sm:$0x1]
    %v107 = vld [vmem:[%s4] sm:$0xf]
    %v108 = vld [vmem:[%s4 + $0x4] sm:$0xf]
    %v109 = vld [vmem:[%s4 + $0x8] sm:$0x1]
    %v113 = vunpack.c.l.b16 %v107
    %v114 = vunpack.c.l.b16 %v108
    %v115 = vunpack.c.l.b16 %v109
    %v116 = vpack.c.b16 %v114, %v113
    %v117 = vpack.c.b16 %v115, %v115
    %vm119 = vcmask 138240
    %v121 = vsel %vm119, %v106, 0
    %vm123 = vcmask 1040384
    %v124 = vsel 0, 4294967295, 65535
    %v125 = vsel %vm123, %v124, 0
    %v127 = vand.u32 %v117, %v125
    %129 = vmatprep.subr.bf16.mxu0 0
    %130 = vmatpush1.bf16.msra.mxu0 %v116
    %131 = vmatprep.subr.bf16.mxu0 0
    %132 = vmatpush1.bf16.msra.mxu0 %v127
    %133 = vmatprep.subr.bf16.mxu0 0
    %134 = vmatpush1.bf16.msra.mxu0 0
    %135 = vmatprep.subr.bf16.mxu0 0
    %136 = vmatpush1.bf16.msra.mxu0 0
    %137 = vmatprep.subr.bf16.mxu0 0
    %138 = vmatpush1.bf16.msra.mxu0 0
    %139 = vmatprep.subr.bf16.mxu0 0
    %140 = vmatpush1.bf16.msra.mxu0 0
    %141 = vmatprep.subr.bf16.mxu0 0
    %142 = vmatpush1.bf16.msra.mxu0 0
    %143 = vmatprep.subr.bf16.mxu0 0
    %144 = vmatpush1.bf16.msra.mxu0 0
    %145 = vmatprep.subr.bf16.mxu0 0
    %146 = vmatpush1.bf16.msra.mxu0 0
    %147 = vmatprep.subr.bf16.mxu0 0
    %148 = vmatpush1.bf16.msra.mxu0 0
    %149 = vmatprep.subr.bf16.mxu0 0
    %150 = vmatpush1.bf16.msra.mxu0 0
    %151 = vmatprep.subr.bf16.mxu0 0
    %152 = vmatpush1.bf16.msra.mxu0 0
    %153 = vmatprep.subr.bf16.mxu0 0
    %154 = vmatpush1.bf16.msra.mxu0 0
    %155 = vmatprep.subr.bf16.mxu0 0
    %156 = vmatpush1.bf16.msra.mxu0 0
    %157 = vmatprep.subr.bf16.mxu0 0
    %158 = vmatpush1.bf16.msra.mxu0 0
    %159 = vmatprep.subr.bf16.mxu0 0
    %160 = vmatpush1.bf16.msra.mxu0 0
    %161 = vmatprep.mubr.bf16.mxu0 0
    %162 = vmatmul.mubr.bf16.gmra.mrb[0].mxu0 %v121
    %v163 = vpop.f32.mrb[0].mxu0
    %v164 = vadd.f32 0.0, %v163
    %v165 = vpop.f32.mrb[0].mxu0
    %v166 = vpop.f32.mrb[0].mxu0
    %v167 = vpop.f32.mrb[0].mxu0
    %168 = vdwg.mxu0
    %v169 = vsub.f32 0.0, %v164
    %v170 = vmul.f32 %v169, 1.442695
    %v171 = vpow.pop %v170
    %v172 = vadd.f32 %v171, 1.0
    %v173 = vrcp.pop %v172
    %v174 = vmul.f32 %v164, %v173
    %v175 = vpack.c.bf16 %v174, %v174
    %v176 = vld [vmem:[#allocation5] sm:$0xf]
    %v177 = vld [vmem:[#allocation5 + $0x4] sm:$0xf]
    %v178 = vld [vmem:[#allocation5 + $0x8] sm:$0xf]
    %v179 = vld [vmem:[#allocation5 + $0xc] sm:$0xf]
    %v180 = vld [vmem:[#allocation5 + $0x10] sm:$0xf]
    %v181 = vld [vmem:[#allocation5 + $0x14] sm:$0xf]
    %v182 = vld [vmem:[#allocation5 + $0x18] sm:$0xf]
    %v183 = vld [vmem:[#allocation5 + $0x1c] sm:$0xf]
    %v184 = vld [vmem:[#allocation5 + $0x20] sm:$0xf]
    %v185 = vld [vmem:[#allocation5 + $0x24] sm:$0xf]
    %v186 = vld [vmem:[#allocation5 + $0x28] sm:$0xf]
    %v187 = vld [vmem:[#allocation5 + $0x2c] sm:$0xf]
    %v188 = vld [vmem:[#allocation5 + $0x30] sm:$0xf]
    %v189 = vld [vmem:[#allocation5 + $0x34] sm:$0xf]
    %v190 = vld [vmem:[#allocation5 + $0x38] sm:$0xf]
    %v191 = vld [vmem:[#allocation5 + $0x3c] sm:$0xf]
    %v208 = vunpack.c.l.b16 %v176
    %v209 = vunpack.c.l.b16 %v177
    %v210 = vunpack.c.l.b16 %v178
    %v211 = vunpack.c.l.b16 %v179
    %v212 = vunpack.c.l.b16 %v180
    %v213 = vunpack.c.l.b16 %v181
    %v214 = vunpack.c.l.b16 %v182
    %v215 = vunpack.c.l.b16 %v183
    %v216 = vunpack.c.l.b16 %v184
    %v217 = vunpack.c.l.b16 %v185
    %v218 = vunpack.c.l.b16 %v186
    %v219 = vunpack.c.l.b16 %v187
    %v220 = vunpack.c.l.b16 %v188
    %v221 = vunpack.c.l.b16 %v189
    %v222 = vunpack.c.l.b16 %v190
    %v223 = vunpack.c.l.b16 %v191
    %v224 = vpack.c.b16 %v209, %v208
    %v225 = vpack.c.b16 %v211, %v210
    %v226 = vpack.c.b16 %v213, %v212
    %v227 = vpack.c.b16 %v215, %v214
    %v228 = vpack.c.b16 %v217, %v216
    %v229 = vpack.c.b16 %v219, %v218
    %v230 = vpack.c.b16 %v221, %v220
    %v231 = vpack.c.b16 %v223, %v222
    %240 = vmatprep.subr.bf16.mxu0 0
    %241 = vmatpush1.bf16.msra.mxu0 %v224
    %242 = vmatprep.subr.bf16.mxu0 0
    %243 = vmatpush1.bf16.msra.mxu0 %v225
    %244 = vmatprep.subr.bf16.mxu0 0
    %245 = vmatpush1.bf16.msra.mxu0 %v226
    %246 = vmatprep.subr.bf16.mxu0 0
    %247 = vmatpush1.bf16.msra.mxu0 %v227
    %248 = vmatprep.subr.bf16.mxu0 0
    %249 = vmatpush1.bf16.msra.mxu0 %v228
    %250 = vmatprep.subr.bf16.mxu0 0
    %251 = vmatpush1.bf16.msra.mxu0 %v229
    %252 = vmatprep.subr.bf16.mxu0 0
    %253 = vmatpush1.bf16.msra.mxu0 %v230
    %254 = vmatprep.subr.bf16.mxu0 0
    %255 = vmatpush1.bf16.msra.mxu0 %v231
    %256 = vmatprep.subr.bf16.mxu0 0
    %257 = vmatpush1.bf16.msra.mxu0 0
    %258 = vmatprep.subr.bf16.mxu0 0
    %259 = vmatpush1.bf16.msra.mxu0 0
    %260 = vmatprep.subr.bf16.mxu0 0
    %261 = vmatpush1.bf16.msra.mxu0 0
    %262 = vmatprep.subr.bf16.mxu0 0
    %263 = vmatpush1.bf16.msra.mxu0 0
    %264 = vmatprep.subr.bf16.mxu0 0
    %265 = vmatpush1.bf16.msra.mxu0 0
    %266 = vmatprep.subr.bf16.mxu0 0
    %267 = vmatpush1.bf16.msra.mxu0 0
    %268 = vmatprep.subr.bf16.mxu0 0
    %269 = vmatpush1.bf16.msra.mxu0 0
    %270 = vmatprep.subr.bf16.mxu0 0
    %271 = vmatpush1.bf16.msra.mxu0 0
    %272 = vmatprep.mubr.bf16.mxu0 0
    %273 = vmatmul.mubr.bf16.gmra.mrb[0].mxu0 %v175
    %v274 = vpop.f32.mrb[0].mxu0
    %v275 = vadd.f32 0.0, %v274
    %v276 = vpop.f32.mrb[0].mxu0
    %v277 = vpop.f32.mrb[0].mxu0
    %v278 = vpop.f32.mrb[0].mxu0
    %279 = vdwg.mxu0
    %v280 = vadd.f32 %v105, %v275
    %281 = vst [vmem:[#allocation7] sm:$0x3] %v280
    // Predicated region
    $region34: #{tpu_custom_call.1} parent=1 // pred_check
      _
    $region35: #{tpu_custom_call.1} parent=1 // pred_check_branch
      %283 = sbr.rel (0) target = $region37
    $region36: #{tpu_custom_call.1} parent=1 // pred_region
      %s285 = ssub.s32 32, 32
      %286 = vsyncadd [#allocation4], %s285
      %s288 = sshll.u32 [#allocation7], 4
      %s289 = int_to_ptr.vmem [resolvable:$true] %s288
      %291 = dma.vmem_to_hbm [thread:$0]  %s289, 32, %s6, [#allocation4]
    $region37: #{tpu_custom_call.1} parent=1 // pred_fallthru
      _
    // Predicated region
    $region38: #{tpu_custom_call.1} parent=1 // pred_check
      _
    $region39: #{tpu_custom_call.1} parent=1 // pred_check_branch
      %293 = sbr.rel (0) target = $region41
    $region40: #{tpu_custom_call.1} parent=1 // pred_region
      %294 = dma.done [#allocation4], 32
    $region41: #{tpu_custom_call.1} parent=1 // pred_fallthru
      _
    %295 = vsyncpa [#allocation3], 1
    %296 = vsyncpa [#allocation6], 1
    %297 = vsyncpa [#allocation4], 1

</llo_original>
